<compile_context>
chip_gen: v6e
topology: v6e:2x2x1
jax: 0.10.0
libtpu: 0.0.40
codegen_flags: <defaults>
</compile_context>

<pallas_src>
import jax
import jax.numpy as jnp
from jax.experimental import pallas as pl
from jax.experimental.pallas import tpu as pltpu


def _round_up(n, m):
    return ((n + m - 1) // m) * m


def _pick_tile(n_rows, tm):
    """Row tile: big, multiple of 8, but always >=2 grid steps when possible."""
    if n_rows <= 8:
        return n_rows                      # single block equal to the full (tiny) row count
    tm_eff = min(tm, _round_up(n_rows, 8))
    half = _round_up((n_rows + 1) // 2, 8)  # keep >=2 steps for v7x's two TensorCores
    return max(8, min(tm_eff, half))


def _supernet_kernel(x_ref, w1_ref, b1_ref, w2_ref, b2_ref,
                     wi_ref, bi_ref, wc_ref, bc_ref,
                     out_ref, latent_ref):
    wdt = w1_ref.dtype
    x = x_ref[...]                                                       # (tm, n_input)

    # --- folded BN + Linear(n_input, 256) + ReLU  (Dropout = identity in eval) ---
    h1 = jnp.dot(x, w1_ref[...], preferred_element_type=jnp.float32) + b1_ref[...]
    h1 = jnp.maximum(h1, 0.0)

    # --- Linear(256, 128-padded) + LeakyReLU(0.01); padded cols are exactly 0 ---
    z2 = jnp.dot(h1.astype(wdt), w2_ref[...],
                 preferred_element_type=jnp.float32) + b2_ref[...]
    h2 = jnp.where(z2 > 0, z2, 0.01 * z2)                               # (tm, 128)
    h2c = h2.astype(wdt)

    # --- heads: instance Linear(64,64) and classifier Linear(64,n_output) ---
    latent_ref[...] = (jnp.dot(h2c, wi_ref[...], preferred_element_type=jnp.float32)
                       + bi_ref[...]).astype(latent_ref.dtype)
    out_ref[...] = (jnp.dot(h2c, wc_ref[...], preferred_element_type=jnp.float32)
                    + bc_ref[...]).astype(out_ref.dtype)


def supernet_forward(x, params, *, tm=4096, compute_dtype=jnp.float32):
    """x: (B, S, n_input) float32.  Returns (out (N, n_output), latent (N, 64))."""
    B, S, n_input = x.shape
    N = B * S
    x2 = x.reshape(N, n_input)                                           # == x.view(-1, x.shape[2])

    (gamma, beta, mean, var, w1, b1, w2, b2, wi, bi, wc, bc) = params
    H1 = w1.shape[1]                                                     # 256
    H2 = w2.shape[1]                                                     # 64
    n_output = wc.shape[1]

    # ---- fold eval-mode BatchNorm1d(eps=1e-14, matches the module) into Linear 1 ----
    scale = gamma * jax.lax.rsqrt(var + 1e-14)                           # (1, n_input)
    w1f = (scale.reshape(n_input, 1) * w1).astype(compute_dtype)         # (n_input, H1)
    b1f = (b1 + (beta - mean * scale) @ w1).astype(jnp.float32)          # (1, H1)

    # ---- pad hidden-64 to 128 lanes (zero cols/rows -> numerics unchanged) ----
    H2p = _round_up(H2, 128)                                             # 128
    w2p = jnp.zeros((H1, H2p), jnp.float32).at[:, :H2].set(w2).astype(compute_dtype)
    b2p = jnp.zeros((1, H2p), jnp.float32).at[:, :H2].set(b2)
    wip = jnp.zeros((H2p, H2), jnp.float32).at[:H2, :].set(wi).astype(compute_dtype)
    wcp = jnp.zeros((H2p, n_output), jnp.float32).at[:H2, :].set(wc).astype(compute_dtype)

    x2c = x2.astype(compute_dtype)

    # ---- row tiling: ragged grid, no row padding / no post-kernel slices ----
    tm_eff = _pick_tile(N, tm)
    grid = (pl.cdiv(N, tm_eff),)
    rep = lambda i: (0, 0)                                               # replicated params
    row = lambda i: (i, 0)                                               # row-tiled arrays

    grid_spec = pltpu.PrefetchScalarGridSpec(
        num_scalar_prefetch=0,
        grid=grid,
        in_specs=[
            pl.BlockSpec((tm_eff, n_input), row),                        # x tile
            pl.BlockSpec((n_input, H1), rep),                            # W1 (BN folded)
            pl.BlockSpec((1, H1), rep),                                  # b1 (BN folded)
            pl.BlockSpec((H1, H2p), rep),                                # W2 (128-padded)
            pl.BlockSpec((1, H2p), rep),                                 # b2 (128-padded)
            pl.BlockSpec((H2p, H2), rep),                                # W_instance (pad rows)
            pl.BlockSpec((1, H2), rep),                                  # b_instance
            pl.BlockSpec((H2p, n_output), rep),                          # W_classifier (pad rows)
            pl.BlockSpec((1, n_output), rep),                            # b_classifier
        ],
        out_specs=(
            pl.BlockSpec((tm_eff, n_output), row),                       # out
            pl.BlockSpec((tm_eff, H2), row),                             # latent
        ),
    )

    itm = jnp.dtype(compute_dtype).itemsize
    flops = 2 * N * (n_input * H1 + H1 * H2p + H2p * (H2 + n_output))
    bytes_accessed = (itm * (N * n_input + n_input * H1 + H1 * H2p
                             + H2p * (H2 + n_output))
                      + 4 * (H1 + H2p + H2 + n_output + N * (H2 + n_output)))

    out, latent = pl.pallas_call(
        _supernet_kernel,
        out_shape=(jax.ShapeDtypeStruct((N, n_output), jnp.float32),
                   jax.ShapeDtypeStruct((N, H2), jnp.float32)),
        grid_spec=grid_spec,
        compiler_params=pltpu.CompilerParams(
            dimension_semantics=("parallel",),
            vmem_limit_bytes=48 * 1024 * 1024),
        cost_estimate=pl.CostEstimate(
            flops=flops, transcendentals=0, bytes_accessed=bytes_accessed),
    )(x2c, w1f, b1f, w2p, b2p, wip, bi, wcp, bc)

    return out, latent


def init_params(key, n_input, n_output):
    """Deterministic synthetic parameters matching SuperNet's shapes.

    Linear weights are stored transposed relative to PyTorch ((in, out) here) so
    the kernel computes x @ W + b."""
    ks = jax.random.split(key, 8)

    def lin(kw, kb, fan_in, fan_out):
        bound = 1.0 / jnp.sqrt(fan_in)
        w = jax.random.uniform(kw, (fan_in, fan_out), jnp.float32, -bound, bound)
        b = jax.random.uniform(kb, (1, fan_out), jnp.float32, -bound, bound)
        return w, b

    # BatchNorm1d running stats / affine params (non-trivial so BN actually does work)
    gamma = 1.0 + 0.1 * jax.random.normal(ks[0], (1, n_input), jnp.float32)
    beta = 0.1 * jax.random.normal(ks[1], (1, n_input), jnp.float32)
    mean = 0.05 * jax.random.normal(ks[2], (1, n_input), jnp.float32)
    var = jnp.abs(1.0 + 0.1 * jax.random.normal(ks[3], (1, n_input), jnp.float32))

    w1, b1 = lin(*jax.random.split(ks[4]), n_input, 256)
    w2, b2 = lin(*jax.random.split(ks[5]), 256, 64)
    wi, bi = lin(*jax.random.split(ks[6]), 64, 64)
    wc, bc = lin(*jax.random.split(ks[7]), 64, n_output)

    return (gamma, beta, mean, var, w1, b1, w2, b2, wi, bi, wc, bc)


def reference_forward(x, params):
    """Pure-JAX reference of the eval-mode PyTorch forward (no BN folding)."""
    (gamma, beta, mean, var, w1, b1, w2, b2, wi, bi, wc, bc) = params
    x2 = x.reshape(-1, x.shape[2])
    xn = (x2 - mean) * jax.lax.rsqrt(var + 1e-14) * gamma + beta
    h1 = jnp.maximum(xn @ w1 + b1, 0.0)
    z2 = h1 @ w2 + b2
    h2 = jnp.where(z2 > 0, z2, 0.01 * z2)
    return h2 @ wc + bc, h2 @ wi + bi


if __name__ == "__main__":
    B, S, n_input, n_output = 2, 8, 32, 10
    key = jax.random.PRNGKey(0)
    kx, kp = jax.random.split(key)

    x = jax.random.normal(kx, (B, S, n_input), jnp.float32)
    params = init_params(kp, n_input, n_output)

    out, latent = supernet_forward(x, params)
    out, latent = jax.block_until_ready((out, latent))

    ref_out, ref_latent = reference_forward(x, params)
    assert out.shape == (B * S, n_output) and latent.shape == (B * S, 64)
    assert jnp.allclose(out, ref_out, atol=2e-5, rtol=2e-5)
    assert jnp.allclose(latent, ref_latent, atol=2e-5, rtol=2e-5)

    print("KERNEL_OK")
</pallas_src>

<mosaic_0001>
module attributes {stable_mosaic.version = 11 : i64} {
  func.func @_supernet_kernel(%arg0: i32, %arg1: memref<8x32xf32, #tpu.memory_space<vmem>>, %arg2: memref<32x256xf32, #tpu.memory_space<vmem>>, %arg3: memref<1x256xf32, #tpu.memory_space<vmem>>, %arg4: memref<256x128xf32, #tpu.memory_space<vmem>>, %arg5: memref<1x128xf32, #tpu.memory_space<vmem>>, %arg6: memref<128x64xf32, #tpu.memory_space<vmem>>, %arg7: memref<1x64xf32, #tpu.memory_space<vmem>>, %arg8: memref<128x10xf32, #tpu.memory_space<vmem>>, %arg9: memref<1x10xf32, #tpu.memory_space<vmem>>, %arg10: memref<8x10xf32, #tpu.memory_space<vmem>>, %arg11: memref<8x64xf32, #tpu.memory_space<vmem>>) attributes {dimension_semantics = [#tpu.dimension_semantics<parallel>], iteration_bounds = array<i64: 2>, scalar_prefetch = 0 : i64, scratch_operands = 0 : i64, tpu.core_type = #tpu.core_type<tc>, window_params = [{transform_indices = @transform_0, window_bounds = array<i64: 8, 32>}, {pipeline_mode = #tpu.pipeline_mode<synchronous>, transform_indices = @transform_1, window_bounds = array<i64: 32, 256>}, {pipeline_mode = #tpu.pipeline_mode<synchronous>, transform_indices = @transform_2, window_bounds = array<i64: 1, 256>}, {pipeline_mode = #tpu.pipeline_mode<synchronous>, transform_indices = @transform_3, window_bounds = array<i64: 256, 128>}, {pipeline_mode = #tpu.pipeline_mode<synchronous>, transform_indices = @transform_4, window_bounds = array<i64: 1, 128>}, {pipeline_mode = #tpu.pipeline_mode<synchronous>, transform_indices = @transform_5, window_bounds = array<i64: 128, 64>}, {pipeline_mode = #tpu.pipeline_mode<synchronous>, transform_indices = @transform_6, window_bounds = array<i64: 1, 64>}, {pipeline_mode = #tpu.pipeline_mode<synchronous>, transform_indices = @transform_7, window_bounds = array<i64: 128, 10>}, {pipeline_mode = #tpu.pipeline_mode<synchronous>, transform_indices = @transform_8, window_bounds = array<i64: 1, 10>}, {transform_indices = @transform_9, window_bounds = array<i64: 8, 10>}, {transform_indices = @transform_10, window_bounds = array<i64: 8, 64>}]} {
    %c0 = arith.constant 0 : index
    %c0_0 = arith.constant 0 : index
    %0 = vector.load %arg1[%c0, %c0_0] : memref<8x32xf32, #tpu.memory_space<vmem>>, vector<8x32xf32>
    %c0_1 = arith.constant 0 : index
    %c0_2 = arith.constant 0 : index
    %1 = vector.load %arg2[%c0_1, %c0_2] : memref<32x256xf32, #tpu.memory_space<vmem>>, vector<32x256xf32>
    %cst = arith.constant dense<0.000000e+00> : vector<8x256xf32>
    %2 = tpu.matmul %0, %1, %cst {dimension_numbers = #tpu.dot_dimension_numbers<[1], [0], [0], [1], [0, 0, 1, 1], [], []>} : vector<8x32xf32>, vector<32x256xf32>, vector<8x256xf32> -> vector<8x256xf32>
    %c0_3 = arith.constant 0 : index
    %c0_4 = arith.constant 0 : index
    %3 = vector.load %arg3[%c0_3, %c0_4] : memref<1x256xf32, #tpu.memory_space<vmem>>, vector<1x256xf32>
    %4 = vector.broadcast %3 : vector<1x256xf32> to vector<8x256xf32>
    %5 = arith.addf %2, %4 : vector<8x256xf32>
    %cst_5 = arith.constant 0.000000e+00 : f32
    %6 = vector.broadcast %cst_5 : f32 to vector<8x256xf32>
    %7 = arith.maximumf %5, %6 : vector<8x256xf32>
    %c0_6 = arith.constant 0 : index
    %c0_7 = arith.constant 0 : index
    %8 = vector.load %arg4[%c0_6, %c0_7] : memref<256x128xf32, #tpu.memory_space<vmem>>, vector<256x128xf32>
    %cst_8 = arith.constant dense<0.000000e+00> : vector<8x128xf32>
    %9 = tpu.matmul %7, %8, %cst_8 {dimension_numbers = #tpu.dot_dimension_numbers<[1], [0], [0], [1], [0, 0, 1, 1], [], []>} : vector<8x256xf32>, vector<256x128xf32>, vector<8x128xf32> -> vector<8x128xf32>
    %c0_9 = arith.constant 0 : index
    %c0_10 = arith.constant 0 : index
    %10 = vector.load %arg5[%c0_9, %c0_10] : memref<1x128xf32, #tpu.memory_space<vmem>>, vector<1x128xf32>
    %11 = vector.broadcast %10 : vector<1x128xf32> to vector<8x128xf32>
    %12 = arith.addf %9, %11 : vector<8x128xf32>
    %cst_11 = arith.constant 0.000000e+00 : f32
    %13 = vector.broadcast %cst_11 : f32 to vector<8x128xf32>
    %14 = arith.cmpf ogt, %12, %13 : vector<8x128xf32>
    %cst_12 = arith.constant 0.00999999977 : f32
    %15 = vector.broadcast %cst_12 : f32 to vector<8x128xf32>
    %16 = arith.mulf %15, %12 : vector<8x128xf32>
    %17 = arith.select %14, %12, %16 : vector<8x128xi1>, vector<8x128xf32>
    %c0_13 = arith.constant 0 : index
    %c0_14 = arith.constant 0 : index
    %18 = vector.load %arg6[%c0_13, %c0_14] : memref<128x64xf32, #tpu.memory_space<vmem>>, vector<128x64xf32>
    %cst_15 = arith.constant dense<0.000000e+00> : vector<8x64xf32>
    %19 = tpu.matmul %17, %18, %cst_15 {dimension_numbers = #tpu.dot_dimension_numbers<[1], [0], [0], [1], [0, 0, 1, 1], [], []>} : vector<8x128xf32>, vector<128x64xf32>, vector<8x64xf32> -> vector<8x64xf32>
    %c0_16 = arith.constant 0 : index
    %c0_17 = arith.constant 0 : index
    %20 = vector.load %arg7[%c0_16, %c0_17] : memref<1x64xf32, #tpu.memory_space<vmem>>, vector<1x64xf32>
    %21 = vector.broadcast %20 : vector<1x64xf32> to vector<8x64xf32>
    %22 = arith.addf %19, %21 : vector<8x64xf32>
    %c0_18 = arith.constant 0 : index
    %c0_19 = arith.constant 0 : index
    %23 = vector.load %arg11[%c0_18, %c0_19] : memref<8x64xf32, #tpu.memory_space<vmem>>, vector<8x64xf32>
    tpu.vector_store %arg11[%c0_18, %c0_19], %22 {strides = array<i32>} : memref<8x64xf32, #tpu.memory_space<vmem>>, vector<8x64xf32>,
    %c0_20 = arith.constant 0 : index
    %c0_21 = arith.constant 0 : index
    %24 = vector.load %arg8[%c0_20, %c0_21] : memref<128x10xf32, #tpu.memory_space<vmem>>, vector<128x10xf32>
    %cst_22 = arith.constant dense<0.000000e+00> : vector<8x10xf32>
    %25 = tpu.matmul %17, %24, %cst_22 {dimension_numbers = #tpu.dot_dimension_numbers<[1], [0], [0], [1], [0, 0, 1, 1], [], []>} : vector<8x128xf32>, vector<128x10xf32>, vector<8x10xf32> -> vector<8x10xf32>
    %c0_23 = arith.constant 0 : index
    %c0_24 = arith.constant 0 : index
    %26 = vector.load %arg9[%c0_23, %c0_24] : memref<1x10xf32, #tpu.memory_space<vmem>>, vector<1x10xf32>
    %27 = vector.broadcast %26 : vector<1x10xf32> to vector<8x10xf32>
    %28 = arith.addf %25, %27 : vector<8x10xf32>
    %c0_25 = arith.constant 0 : index
    %c0_26 = arith.constant 0 : index
    %29 = vector.load %arg10[%c0_25, %c0_26] : memref<8x10xf32, #tpu.memory_space<vmem>>, vector<8x10xf32>
    tpu.vector_store %arg10[%c0_25, %c0_26], %28 {strides = array<i32>} : memref<8x10xf32, #tpu.memory_space<vmem>>, vector<8x10xf32>,
    return
  }
  func.func @transform_0(%arg0: i32) -> (i32, i32) {
    %c0_i32 = arith.constant 0 : i32
    %c0_i32_0 = arith.constant 0 : i32
    return %arg0, %c0_i32 : i32, i32
  }
  func.func @transform_1(%arg0: i32) -> (i32, i32) {
    %c0_i32 = arith.constant 0 : i32
    %c0_i32_0 = arith.constant 0 : i32
    %c0_i32_1 = arith.constant 0 : i32
    return %c0_i32, %c0_i32_0 : i32, i32
  }
  func.func @transform_2(%arg0: i32) -> (i32, i32) {
    %c0_i32 = arith.constant 0 : i32
    %c0_i32_0 = arith.constant 0 : i32
    %c0_i32_1 = arith.constant 0 : i32
    return %c0_i32, %c0_i32_0 : i32, i32
  }
  func.func @transform_3(%arg0: i32) -> (i32, i32) {
    %c0_i32 = arith.constant 0 : i32
    %c0_i32_0 = arith.constant 0 : i32
    %c0_i32_1 = arith.constant 0 : i32
    return %c0_i32, %c0_i32_0 : i32, i32
  }
  func.func @transform_4(%arg0: i32) -> (i32, i32) {
    %c0_i32 = arith.constant 0 : i32
    %c0_i32_0 = arith.constant 0 : i32
    %c0_i32_1 = arith.constant 0 : i32
    return %c0_i32, %c0_i32_0 : i32, i32
  }
  func.func @transform_5(%arg0: i32) -> (i32, i32) {
    %c0_i32 = arith.constant 0 : i32
    %c0_i32_0 = arith.constant 0 : i32
    %c0_i32_1 = arith.constant 0 : i32
    return %c0_i32, %c0_i32_0 : i32, i32
  }
  func.func @transform_6(%arg0: i32) -> (i32, i32) {
    %c0_i32 = arith.constant 0 : i32
    %c0_i32_0 = arith.constant 0 : i32
    %c0_i32_1 = arith.constant 0 : i32
    return %c0_i32, %c0_i32_0 : i32, i32
  }
  func.func @transform_7(%arg0: i32) -> (i32, i32) {
    %c0_i32 = arith.constant 0 : i32
    %c0_i32_0 = arith.constant 0 : i32
    %c0_i32_1 = arith.constant 0 : i32
    return %c0_i32, %c0_i32_0 : i32, i32
  }
  func.func @transform_8(%arg0: i32) -> (i32, i32) {
    %c0_i32 = arith.constant 0 : i32
    %c0_i32_0 = arith.constant 0 : i32
    %c0_i32_1 = arith.constant 0 : i32
    return %c0_i32, %c0_i32_0 : i32, i32
  }
  func.func @transform_9(%arg0: i32) -> (i32, i32) {
    %c0_i32 = arith.constant 0 : i32
    %c0_i32_0 = arith.constant 0 : i32
    return %arg0, %c0_i32 : i32, i32
  }
  func.func @transform_10(%arg0: i32) -> (i32, i32) {
    %c0_i32 = arith.constant 0 : i32
    %c0_i32_0 = arith.constant 0 : i32
    return %arg0, %c0_i32 : i32, i32
  }
}

</mosaic_0001>

<llo_original>
// kernel: tpu_custom_call.1
$region0: #{tpu_custom_call.1}
  #allocation0 [shape = 'u32[]', space=smem, size = 0x4, offset = 0x4, fixed_abs, tag = 'smem constant byte address 0x4 - core index']
  #allocation1 [shape = 'u32[144,128]{1,0:T(1,128)}', space=vmem, size = 0x12000, scoped, tag = 'internal scratch']
  %s0 = inlined_call_operand.hbm [shape: f32[16,32], index: 0, kind: input, shape index: {}]
  %s1 = inlined_call_operand.vmem [shape: f32[32,256], index: 1, kind: input, shape index: {}]
  %s2 = inlined_call_operand.vmem [shape: f32[1,256], index: 2, kind: input, shape index: {}]
  %s3 = inlined_call_operand.vmem [shape: f32[256,128], index: 3, kind: input, shape index: {}]
  %s4 = inlined_call_operand.vmem [shape: f32[1,128], index: 4, kind: input, shape index: {}]
  %s5 = inlined_call_operand.vmem [shape: f32[128,64], index: 5, kind: input, shape index: {}]
  %s6 = inlined_call_operand.vmem [shape: f32[1,64], index: 6, kind: input, shape index: {}]
  %s7 = inlined_call_operand.vmem [shape: f32[128,10], index: 7, kind: input, shape index: {}]
  %s8 = inlined_call_operand.vmem [shape: f32[1,10], index: 8, kind: input, shape index: {}]
  %s9 = inlined_call_operand.hbm [shape: f32[16,10], index: 9, kind: output, shape index: {0}]
  %s10 = inlined_call_operand.hbm [shape: f32[16,64], index: 10, kind: output, shape index: {1}]
  %11 = xla_tuple %s9, %s10
  %s12 = sld [smem:[#allocation0]]
  $region81: #{tpu_custom_call.1} parent=0
    _
  %s14 = ssub.s32 1, %s12
  %s15 = scalar_select 0, %s14, %s12
  $region1: #{tpu_custom_call.1} parent=0
    #allocation2 [shape = 'u8[8192]{0}', space=vmem, size = 0x2000, scoped, tag = 'input window, operand 0']
    #allocation3 [shape = 's32[2]{0}', space=sflag, size = 0x8, scoped, tag = 'scoped memory for tpu_custom_call.1']
    #allocation4 [shape = 's32[2]{0}', space=sflag, size = 0x8, scoped, tag = 'scoped memory for tpu_custom_call.1']
    #allocation5 [shape = 'u8[8192]{0}', space=vmem, size = 0x2000, scoped, tag = 'output window, operand 0']
    #allocation6 [shape = 'u8[8192]{0}', space=vmem, size = 0x2000, scoped, tag = 'output window, operand 1']
    #allocation7 [shape = 's32[2]{0}', space=sflag, size = 0x8, scoped, tag = 'scoped memory for tpu_custom_call.1']
    %16 = vsyncpa [#allocation3], 0
    %s17 = scalar_lea.sflag [#allocation3], 1
    %18 = vsyncpa %s17, 0
    %19 = vsyncpa [#allocation4], 0
    %s20 = scalar_lea.sflag [#allocation4], 1
    %21 = vsyncpa %s20, 0
    %22 = vsyncpa [#allocation7], 0
    %s23 = scalar_lea.sflag [#allocation7], 1
    %24 = vsyncpa %s23, 0
    loop: start=0, step=1, limit=4
    $region2: #{tpu_custom_call.1} parent=1 // loop_pre_header
      _
    $region3: #{tpu_custom_call.1} parent=1 // loop_header
      %s26 = sphi 0, %s30
      %p27 = scmp.ge.s32.totalorder %s26, 4
      %s36 = sphi 0, %s38
      %s39 = sphi 0, %s36
      %s40 = sphi 0, %s39
      %s56 = sphi 0, %s40
      %s60 = sphi 0, %s60
      %s62 = sphi 0, %s60
      %s63 = sphi 0, %s62
      %s77 = sphi 0, %s63
      %s81 = sphi 0, %s81
      %s83 = sphi 0, %s81
      %s84 = sphi 0, %s83
      %s98 = sphi 0, %s84
      %s102 = sphi 0, %s102
      %s104 = sphi 0, %s102
      %s105 = sphi 0, %s104
      %s119 = sphi 0, %s105
      %s123 = sphi 0, %s123
      %s125 = sphi 0, %s123
      %s126 = sphi 0, %s125
      %s140 = sphi 0, %s126
      %s144 = sphi 0, %s144
      %s146 = sphi 0, %s144
      %s147 = sphi 0, %s146
      %s161 = sphi 0, %s147
      %s165 = sphi 0, %s165
      %s167 = sphi 0, %s165
      %s168 = sphi 0, %s167
      %s182 = sphi 0, %s168
      %s186 = sphi 0, %s186
      %s188 = sphi 0, %s186
      %s189 = sphi 0, %s188
      %s203 = sphi 0, %s189
      %s207 = sphi 0, %s207
      %s209 = sphi 0, %s207
      %s210 = sphi 0, %s209
      %s224 = sphi 0, %s210
      %s230 = sphi 0, %s232
      %s233 = sphi 0, %s230
      %s234 = sphi 0, %s233
      %s250 = sphi 0, %s234
      %s256 = sphi 0, %s258
      %s259 = sphi 0, %s256
      %s260 = sphi 0, %s259
      %s276 = sphi 0, %s260
    $region4: #{tpu_custom_call.1} parent=1 // loop_header_branch
      %29 = sbr.rel (%p27) target = $region8
    $region5: #{tpu_custom_call.1} parent=1 // loop_body
      %s31 = ssub.s32 %s26, 1
      %s32 = ssub.s32 %s26, 2
      %s33 = sadd.s32 %s26, 1
      %s34 = ssub.s32 %s26, %s33
      %p35 = scmp.eq.s32.totalorder %s34, 0
      %s37 = sadd.s32 %s36, 1
      %s38 = scalar_select %p35, %s36, %s37
      %p41 = pneg %p35
      %p42 = scmp.eq.s32.totalorder %s26, 1
      %p43 = por %p41, %p42
      %p44 = scmp.ne.s32.totalorder %s36, %s39
      %p45 = scmp.eq.s32.totalorder %s26, 0
      %p46 = por %p44, %p45
      %p47 = scmp.ne.s32.totalorder %s36, %s39
      %p48 = scmp.eq.s32.totalorder %s31, 1
      %p49 = por %p47, %p48
      %p50 = scmp.ne.s32.totalorder %s39, %s40
      %p51 = scmp.eq.s32.totalorder %s31, 0
      %p52 = por %p50, %p51
      %p53 = scmp.ne.s32.totalorder %s39, %s40
      %p54 = scmp.eq.s32.totalorder %s32, 1
      %p55 = por %p53, %p54
      %p57 = scmp.ne.s32.totalorder %s40, %s56
      %p58 = scmp.eq.s32.totalorder %s32, 0
      %p59 = por %p57, %p58
      %s61 = sadd.s32 %s60, 1
      %p64 = scmp.eq.s32.totalorder %s26, 1
      %p65 = scmp.ne.s32.totalorder %s60, %s62
      %p66 = scmp.eq.s32.totalorder %s26, 0
      %p67 = por %p65, %p66
      %p68 = scmp.ne.s32.totalorder %s60, %s62
      %p69 = scmp.eq.s32.totalorder %s31, 1
      %p70 = por %p68, %p69
      %p71 = scmp.ne.s32.totalorder %s62, %s63
      %p72 = scmp.eq.s32.totalorder %s31, 0
      %p73 = por %p71, %p72
      %p74 = scmp.ne.s32.totalorder %s62, %s63
      %p75 = scmp.eq.s32.totalorder %s32, 1
      %p76 = por %p74, %p75
      %p78 = scmp.ne.s32.totalorder %s63, %s77
      %p79 = scmp.eq.s32.totalorder %s32, 0
      %p80 = por %p78, %p79
      %s82 = sadd.s32 %s81, 1
      %p85 = scmp.eq.s32.totalorder %s26, 1
      %p86 = scmp.ne.s32.totalorder %s81, %s83
      %p87 = scmp.eq.s32.totalorder %s26, 0
      %p88 = por %p86, %p87
      %p89 = scmp.ne.s32.totalorder %s81, %s83
      %p90 = scmp.eq.s32.totalorder %s31, 1
      %p91 = por %p89, %p90
      %p92 = scmp.ne.s32.totalorder %s83, %s84
      %p93 = scmp.eq.s32.totalorder %s31, 0
      %p94 = por %p92, %p93
      %p95 = scmp.ne.s32.totalorder %s83, %s84
      %p96 = scmp.eq.s32.totalorder %s32, 1
      %p97 = por %p95, %p96
      %p99 = scmp.ne.s32.totalorder %s84, %s98
      %p100 = scmp.eq.s32.totalorder %s32, 0
      %p101 = por %p99, %p100
      %s103 = sadd.s32 %s102, 1
      %p106 = scmp.eq.s32.totalorder %s26, 1
      %p107 = scmp.ne.s32.totalorder %s102, %s104
      %p108 = scmp.eq.s32.totalorder %s26, 0
      %p109 = por %p107, %p108
      %p110 = scmp.ne.s32.totalorder %s102, %s104
      %p111 = scmp.eq.s32.totalorder %s31, 1
      %p112 = por %p110, %p111
      %p113 = scmp.ne.s32.totalorder %s104, %s105
      %p114 = scmp.eq.s32.totalorder %s31, 0
      %p115 = por %p113, %p114
      %p116 = scmp.ne.s32.totalorder %s104, %s105
      %p117 = scmp.eq.s32.totalorder %s32, 1
      %p118 = por %p116, %p117
      %p120 = scmp.ne.s32.totalorder %s105, %s119
      %p121 = scmp.eq.s32.totalorder %s32, 0
      %p122 = por %p120, %p121
      %s124 = sadd.s32 %s123, 1
      %p127 = scmp.eq.s32.totalorder %s26, 1
      %p128 = scmp.ne.s32.totalorder %s123, %s125
      %p129 = scmp.eq.s32.totalorder %s26, 0
      %p130 = por %p128, %p129
      %p131 = scmp.ne.s32.totalorder %s123, %s125
      %p132 = scmp.eq.s32.totalorder %s31, 1
      %p133 = por %p131, %p132
      %p134 = scmp.ne.s32.totalorder %s125, %s126
      %p135 = scmp.eq.s32.totalorder %s31, 0
      %p136 = por %p134, %p135
      %p137 = scmp.ne.s32.totalorder %s125, %s126
      %p138 = scmp.eq.s32.totalorder %s32, 1
      %p139 = por %p137, %p138
      %p141 = scmp.ne.s32.totalorder %s126, %s140
      %p142 = scmp.eq.s32.totalorder %s32, 0
      %p143 = por %p141, %p142
      %s145 = sadd.s32 %s144, 1
      %p148 = scmp.eq.s32.totalorder %s26, 1
      %p149 = scmp.ne.s32.totalorder %s144, %s146
      %p150 = scmp.eq.s32.totalorder %s26, 0
      %p151 = por %p149, %p150
      %p152 = scmp.ne.s32.totalorder %s144, %s146
      %p153 = scmp.eq.s32.totalorder %s31, 1
      %p154 = por %p152, %p153
      %p155 = scmp.ne.s32.totalorder %s146, %s147
      %p156 = scmp.eq.s32.totalorder %s31, 0
      %p157 = por %p155, %p156
      %p158 = scmp.ne.s32.totalorder %s146, %s147
      %p159 = scmp.eq.s32.totalorder %s32, 1
      %p160 = por %p158, %p159
      %p162 = scmp.ne.s32.totalorder %s147, %s161
      %p163 = scmp.eq.s32.totalorder %s32, 0
      %p164 = por %p162, %p163
      %s166 = sadd.s32 %s165, 1
      %p169 = scmp.eq.s32.totalorder %s26, 1
      %p170 = scmp.ne.s32.totalorder %s165, %s167
      %p171 = scmp.eq.s32.totalorder %s26, 0
      %p172 = por %p170, %p171
      %p173 = scmp.ne.s32.totalorder %s165, %s167
      %p174 = scmp.eq.s32.totalorder %s31, 1
      %p175 = por %p173, %p174
      %p176 = scmp.ne.s32.totalorder %s167, %s168
      %p177 = scmp.eq.s32.totalorder %s31, 0
      %p178 = por %p176, %p177
      %p179 = scmp.ne.s32.totalorder %s167, %s168
      %p180 = scmp.eq.s32.totalorder %s32, 1
      %p181 = por %p179, %p180
      %p183 = scmp.ne.s32.totalorder %s168, %s182
      %p184 = scmp.eq.s32.totalorder %s32, 0
      %p185 = por %p183, %p184
      %s187 = sadd.s32 %s186, 1
      %p190 = scmp.eq.s32.totalorder %s26, 1
      %p191 = scmp.ne.s32.totalorder %s186, %s188
      %p192 = scmp.eq.s32.totalorder %s26, 0
      %p193 = por %p191, %p192
      %p194 = scmp.ne.s32.totalorder %s186, %s188
      %p195 = scmp.eq.s32.totalorder %s31, 1
      %p196 = por %p194, %p195
      %p197 = scmp.ne.s32.totalorder %s188, %s189
      %p198 = scmp.eq.s32.totalorder %s31, 0
      %p199 = por %p197, %p198
      %p200 = scmp.ne.s32.totalorder %s188, %s189
      %p201 = scmp.eq.s32.totalorder %s32, 1
      %p202 = por %p200, %p201
      %p204 = scmp.ne.s32.totalorder %s189, %s203
      %p205 = scmp.eq.s32.totalorder %s32, 0
      %p206 = por %p204, %p205
      %s208 = sadd.s32 %s207, 1
      %p211 = scmp.eq.s32.totalorder %s26, 1
      %p212 = scmp.ne.s32.totalorder %s207, %s209
      %p213 = scmp.eq.s32.totalorder %s26, 0
      %p214 = por %p212, %p213
      %p215 = scmp.ne.s32.totalorder %s207, %s209
      %p216 = scmp.eq.s32.totalorder %s31, 1
      %p217 = por %p215, %p216
      %p218 = scmp.ne.s32.totalorder %s209, %s210
      %p219 = scmp.eq.s32.totalorder %s31, 0
      %p220 = por %p218, %p219
      %p221 = scmp.ne.s32.totalorder %s209, %s210
      %p222 = scmp.eq.s32.totalorder %s32, 1
      %p223 = por %p221, %p222
      %p225 = scmp.ne.s32.totalorder %s210, %s224
      %p226 = scmp.eq.s32.totalorder %s32, 0
      %p227 = por %p225, %p226
      %s228 = ssub.s32 %s26, %s33
      %p229 = scmp.eq.s32.totalorder %s228, 0
      %s231 = sadd.s32 %s230, 1
      %s232 = scalar_select %p229, %s230, %s231
      %p235 = pneg %p229
      %p236 = scmp.eq.s32.totalorder %s26, 1
      %p237 = por %p235, %p236
      %p238 = scmp.ne.s32.totalorder %s230, %s233
      %p239 = scmp.eq.s32.totalorder %s26, 0
      %p240 = por %p238, %p239
      %p241 = scmp.ne.s32.totalorder %s230, %s233
      %p242 = scmp.eq.s32.totalorder %s31, 1
      %p243 = por %p241, %p242
      %p244 = scmp.ne.s32.totalorder %s233, %s234
      %p245 = scmp.eq.s32.totalorder %s31, 0
      %p246 = por %p244, %p245
      %p247 = scmp.ne.s32.totalorder %s233, %s234
      %p248 = scmp.eq.s32.totalorder %s32, 1
      %p249 = por %p247, %p248
      %p251 = scmp.ne.s32.totalorder %s234, %s250
      %p252 = scmp.eq.s32.totalorder %s32, 0
      %p253 = por %p251, %p252
      %s254 = ssub.s32 %s26, %s33
      %p255 = scmp.eq.s32.totalorder %s254, 0
      %s257 = sadd.s32 %s256, 1
      %s258 = scalar_select %p255, %s256, %s257
      %p261 = pneg %p255
      %p262 = scmp.eq.s32.totalorder %s26, 1
      %p263 = por %p261, %p262
      %p264 = scmp.ne.s32.totalorder %s256, %s259
      %p265 = scmp.eq.s32.totalorder %s26, 0
      %p266 = por %p264, %p265
      %p267 = scmp.ne.s32.totalorder %s256, %s259
      %p268 = scmp.eq.s32.totalorder %s31, 1
      %p269 = por %p267, %p268
      %p270 = scmp.ne.s32.totalorder %s259, %s260
      %p271 = scmp.eq.s32.totalorder %s31, 0
      %p272 = por %p270, %p271
      %p273 = scmp.ne.s32.totalorder %s259, %s260
      %p274 = scmp.eq.s32.totalorder %s32, 1
      %p275 = por %p273, %p274
      %p277 = scmp.ne.s32.totalorder %s260, %s276
      %p278 = scmp.eq.s32.totalorder %s32, 0
      %p279 = por %p277, %p278
      %p280 = scmp.le.s32.totalorder 1, %s26
      %p281 = scmp.lt.s32.totalorder %s26, 3
      %p282 = pnand %p280, %p281
      %p283 = pneg %p282
      // Predicated region
      $region9: #{tpu_custom_call.1} parent=5 // pred_check
        _
      $region10: #{tpu_custom_call.1} parent=5 // pred_check_branch
        %285 = sbr.rel (%p282) target = $region12
      $region11: #{tpu_custom_call.1} parent=5 // pred_region
        %s286 = ssub.s32 %s26, 1
        // Predicated region
        $region13: #{tpu_custom_call.1} parent=11 // pred_check
          %p287 = pneg %p73
        $region14: #{tpu_custom_call.1} parent=11 // pred_check_branch
          %289 = sbr.rel (%p287) target = $region16
        $region15: #{tpu_custom_call.1} parent=11 // pred_region
          _
        $region16: #{tpu_custom_call.1} parent=11 // pred_fallthru
          _
        // Predicated region
        $region17: #{tpu_custom_call.1} parent=11 // pred_check
          %p290 = pneg %p94
        $region18: #{tpu_custom_call.1} parent=11 // pred_check_branch
          %292 = sbr.rel (%p290) target = $region20
        $region19: #{tpu_custom_call.1} parent=11 // pred_region
          _
        $region20: #{tpu_custom_call.1} parent=11 // pred_fallthru
          _
        // Predicated region
        $region21: #{tpu_custom_call.1} parent=11 // pred_check
          %p293 = pneg %p115
        $region22: #{tpu_custom_call.1} parent=11 // pred_check_branch
          %295 = sbr.rel (%p293) target = $region24
        $region23: #{tpu_custom_call.1} parent=11 // pred_region
          _
        $region24: #{tpu_custom_call.1} parent=11 // pred_fallthru
          _
        // Predicated region
        $region25: #{tpu_custom_call.1} parent=11 // pred_check
          %p296 = pneg %p136
        $region26: #{tpu_custom_call.1} parent=11 // pred_check_branch
          %298 = sbr.rel (%p296) target = $region28
        $region27: #{tpu_custom_call.1} parent=11 // pred_region
          _
        $region28: #{tpu_custom_call.1} parent=11 // pred_fallthru
          _
        // Predicated region
        $region29: #{tpu_custom_call.1} parent=11 // pred_check
          %p299 = pneg %p157
        $region30: #{tpu_custom_call.1} parent=11 // pred_check_branch
          %301 = sbr.rel (%p299) target = $region32
        $region31: #{tpu_custom_call.1} parent=11 // pred_region
          _
        $region32: #{tpu_custom_call.1} parent=11 // pred_fallthru
          _
        // Predicated region
        $region33: #{tpu_custom_call.1} parent=11 // pred_check
          %p302 = pneg %p178
        $region34: #{tpu_custom_call.1} parent=11 // pred_check_branch
          %304 = sbr.rel (%p302) target = $region36
        $region35: #{tpu_custom_call.1} parent=11 // pred_region
          _
        $region36: #{tpu_custom_call.1} parent=11 // pred_fallthru
          _
        // Predicated region
        $region37: #{tpu_custom_call.1} parent=11 // pred_check
          %p305 = pneg %p199
        $region38: #{tpu_custom_call.1} parent=11 // pred_check_branch
          %307 = sbr.rel (%p305) target = $region40
        $region39: #{tpu_custom_call.1} parent=11 // pred_region
          _
        $region40: #{tpu_custom_call.1} parent=11 // pred_fallthru
          _
        // Predicated region
        $region41: #{tpu_custom_call.1} parent=11 // pred_check
          %p308 = pneg %p220
        $region42: #{tpu_custom_call.1} parent=11 // pred_check_branch
          %310 = sbr.rel (%p308) target = $region44
        $region43: #{tpu_custom_call.1} parent=11 // pred_region
          _
        $region44: #{tpu_custom_call.1} parent=11 // pred_fallthru
          _
      $region12: #{tpu_custom_call.1} parent=5 // pred_fallthru
        _
      %p311 = scmp.lt.s32.totalorder %s26, 2
      // Predicated region
      $region45: #{tpu_custom_call.1} parent=5 // pred_check
        %p312 = pneg %p311
      $region46: #{tpu_custom_call.1} parent=5 // pred_check_branch
        %314 = sbr.rel (%p312) target = $region48
      $region47: #{tpu_custom_call.1} parent=5 // pred_region
        // Predicated region
        $region49: #{tpu_custom_call.1} parent=47 // pred_check
          %p315 = pneg %p46
        $region50: #{tpu_custom_call.1} parent=47 // pred_check_branch
          %317 = sbr.rel (%p315) target = $region52
        $region51: #{tpu_custom_call.1} parent=47 // pred_region
          %s318 = sand.u32 %s36, 1
          %s319 = scalar_lea.sflag [#allocation3], %s318
          %s320 = sand.u32 %s36, 1
          %s321 = smul.addr %s320, 8
          %s322 = scalar_lea.vmem [#allocation2], %s321
          %s324 = ssub.s32 128, 128
          %325 = vsyncadd %s319, %s324
          %s326 = smul.addr %s26, 128
          %s327 = scalar_lea.hbm %s0, %s326
          %s329 = sshll.u32 %s322, 4
          %s330 = int_to_ptr.vmem [resolvable:$true] %s329
          %332 = dma.hbm_to_vmem [thread:$0]  %s327, 128, %s330, %s319
        $region52: #{tpu_custom_call.1} parent=47 // pred_fallthru
          _
      $region48: #{tpu_custom_call.1} parent=5 // pred_fallthru
        _
      %p333 = scmp.le.s32.totalorder 1, %s26
      %p334 = scmp.lt.s32.totalorder %s26, 3
      %p335 = pnand %p333, %p334
      %p336 = pneg %p335
      // Predicated region
      $region53: #{tpu_custom_call.1} parent=5 // pred_check
        _
      $region54: #{tpu_custom_call.1} parent=5 // pred_check_branch
        %338 = sbr.rel (%p335) target = $region56
      $region55: #{tpu_custom_call.1} parent=5 // pred_region
        %s339 = ssub.s32 %s26, 1
        %s340 = sand.u32 %s39, 1
        %s341 = scalar_lea.sflag [#allocation3], %s340
        %s342 = sand.u32 %s39, 1
        %s343 = smul.addr %s342, 8
        %s344 = scalar_lea.vmem [#allocation2], %s343
        // Predicated region
        $region57: #{tpu_custom_call.1} parent=55 // pred_check
          %p345 = pneg %p52
        $region58: #{tpu_custom_call.1} parent=55 // pred_check_branch
          %347 = sbr.rel (%p345) target = $region60
        $region59: #{tpu_custom_call.1} parent=55 // pred_region
          %348 = dma.done %s341, 128
        $region60: #{tpu_custom_call.1} parent=55 // pred_fallthru
          _
        %s349 = sand.u32 %s39, 1
        %s350 = scalar_lea.sflag [#allocation3], %s349
        %s351 = sand.u32 %s39, 1
        %s352 = smul.addr %s351, 8
        %s353 = scalar_lea.vmem [#allocation2], %s352
        %p354 = pneg %p52
        %p355 = pneg %p49
        %p356 = pneg %p73
        %p357 = pneg %p70
        %p358 = pneg %p94
        %p359 = pneg %p91
        %p360 = pneg %p115
        %p361 = pneg %p112
        %p362 = pneg %p136
        %p363 = pneg %p133
        %p364 = pneg %p157
        %p365 = pneg %p154
        %p366 = pneg %p178
        %p367 = pneg %p175
        %p368 = pneg %p199
        %p369 = pneg %p196
        %p370 = pneg %p220
        %p371 = pneg %p217
        %p372 = pneg %p246
        %p373 = pneg %p243
        %s374 = sand.u32 %s233, 1
        %s375 = scalar_lea.sflag [#allocation4], %s374
        %s376 = sand.u32 %s233, 1
        %s377 = smul.addr %s376, 8
        %s378 = scalar_lea.vmem [#allocation5], %s377
        %p379 = pneg %p272
        %p380 = pneg %p269
        %s381 = sand.u32 %s259, 1
        %s382 = scalar_lea.sflag [#allocation7], %s381
        %s383 = sand.u32 %s259, 1
        %s384 = smul.addr %s383, 8
        %s385 = scalar_lea.vmem [#allocation6], %s384
        %v386 = vld [vmem:[%s344] sm:$0xff]
        %v387 = vld [vmem:[%s1] sm:$0xff]
        %v388 = vld [vmem:[%s1 + $0x8] sm:$0xff]
        %v389 = vld [vmem:[%s1 + $0x10] sm:$0xff]
        %v390 = vld [vmem:[%s1 + $0x18] sm:$0xff]
        %v391 = vld [vmem:[%s1 + $0x20] sm:$0xff]
        %v392 = vld [vmem:[%s1 + $0x28] sm:$0xff]
        %v393 = vld [vmem:[%s1 + $0x30] sm:$0xff]
        %v394 = vld [vmem:[%s1 + $0x38] sm:$0xff]
        %v395 = vld [vmem:[%s2] sm:$0x3]
        %v397 = vlaneseq
        %v398 = vshrl.u32 %v397, 7
        %v399 = vsub.s32 0, %v398
        %v400 = vrot.slane %v395, %v399
        %v401 = vlaneseq
        %v402 = vshrl.u32 %v401, 7
        %v403 = vsub.s32 1, %v402
        %v404 = vrot.slane %v395, %v403
        %vm407 = vcmask 261120
        %v409 = vsel %vm407, %v386, 0
        %411 = vmatprep.subr.mxu0 0.0
        %412 = vmatpush1.msra.mxu0 0.0
        %413 = vmatprep.subr.mxu0 0.0
        %414 = vmatpush1.msra.mxu0 0.0
        %415 = vmatprep.subr.mxu0 0.0
        %416 = vmatpush1.msra.mxu0 0.0
        %417 = vmatprep.subr.mxu0 0.0
        %418 = vmatpush1.msra.mxu0 0.0
        %419 = vmatprep.subr.mxu0 0.0
        %420 = vmatpush1.msra.mxu0 0.0
        %421 = vmatprep.subr.mxu0 0.0
        %422 = vmatpush1.msra.mxu0 0.0
        %423 = vmatprep.subr.mxu0 0.0
        %424 = vmatpush1.msra.mxu0 0.0
        %425 = vmatprep.subr.mxu0 0.0
        %426 = vmatpush1.msra.mxu0 0.0
        %427 = vmatprep.subr.mxu0 0.0
        %428 = vmatpush1.msra.mxu0 0.0
        %429 = vmatprep.subr.mxu0 0.0
        %430 = vmatpush1.msra.mxu0 0.0
        %431 = vmatprep.subr.mxu0 0.0
        %432 = vmatpush1.msra.mxu0 0.0
        %433 = vmatprep.subr.mxu0 0.0
        %434 = vmatpush1.msra.mxu0 0.0
        %435 = vmatprep.subr.mxu0 %v394
        %436 = vmatpush1.msra.mxu0 %v393
        %437 = vmatprep.subr.mxu0 %v392
        %438 = vmatpush1.msra.mxu0 %v391
        %439 = vmatprep.subr.mxu0 %v390
        %440 = vmatpush1.msra.mxu0 %v389
        %441 = vmatprep.subr.mxu0 %v388
        %442 = vmatpush1.msra.mxu0 %v387
        %443 = vmatprep.subr.mxu0 0.0
        %444 = vmatpush2.msra.mxu0 0.0
        %445 = vmatprep.subr.mxu0 0.0
        %446 = vmatpush2.msra.mxu0 0.0
        %447 = vmatprep.subr.mxu0 0.0
        %448 = vmatpush2.msra.mxu0 0.0
        %449 = vmatprep.subr.mxu0 0.0
        %450 = vmatpush2.msra.mxu0 0.0
        %451 = vmatprep.subr.mxu0 0.0
        %452 = vmatpush2.msra.mxu0 0.0
        %453 = vmatprep.subr.mxu0 0.0
        %454 = vmatpush2.msra.mxu0 0.0
        %455 = vmatprep.subr.mxu0 0.0
        %456 = vmatpush2.msra.mxu0 0.0
        %457 = vmatprep.subr.mxu0 0.0
        %458 = vmatpush2.msra.mxu0 0.0
        %459 = vmatprep.subr.mxu0 0.0
        %460 = vmatpush2.msra.mxu0 0.0
        %461 = vmatprep.subr.mxu0 0.0
        %462 = vmatpush2.msra.mxu0 0.0
        %463 = vmatprep.subr.mxu0 0.0
        %464 = vmatpush2.msra.mxu0 0.0
        %465 = vmatprep.subr.mxu0 0.0
        %466 = vmatpush2.msra.mxu0 0.0
        %467 = vmatprep.subr.mxu0 0.0
        %468 = vmatpush2.msra.mxu0 0.0
        %469 = vmatprep.subr.mxu0 0.0
        %470 = vmatpush2.msra.mxu0 0.0
        %471 = vmatprep.subr.mxu0 0.0
        %472 = vmatpush2.msra.mxu0 0.0
        %473 = vmatprep.subr.mxu0 0.0
        %474 = vmatpush2.msra.mxu0 0.0
        %475 = vmatprep.mubr.f32.mxu0 0.0
        %476 = vmatmul.mubr.f32.gmra.mxu0 %v409
        %v477 = vpop.f32.mrf.mxu0
        %v478 = vadd.f32 %v400, %v477
        %v479 = vpop.f32.mrf.mxu0
        %v480 = vadd.f32 %v404, %v479
        %481 = vdwg.mxu0
        %v482 = vmax.f32 %v478, 0.0
        %v483 = vmax.f32 %v480, 0.0
        %v484 = vld [vmem:[%s3] sm:$0xff]
        %v485 = vld [vmem:[%s3 + $0x8] sm:$0xff]
        %v486 = vld [vmem:[%s3 + $0x10] sm:$0xff]
        %v487 = vld [vmem:[%s3 + $0x18] sm:$0xff]
        %v488 = vld [vmem:[%s3 + $0x20] sm:$0xff]
        %v489 = vld [vmem:[%s3 + $0x28] sm:$0xff]
        %v490 = vld [vmem:[%s3 + $0x30] sm:$0xff]
        %v491 = vld [vmem:[%s3 + $0x38] sm:$0xff]
        %v492 = vld [vmem:[%s3 + $0x40] sm:$0xff]
        %v493 = vld [vmem:[%s3 + $0x48] sm:$0xff]
        %v494 = vld [vmem:[%s3 + $0x50] sm:$0xff]
        %v495 = vld [vmem:[%s3 + $0x58] sm:$0xff]
        %v496 = vld [vmem:[%s3 + $0x60] sm:$0xff]
        %v497 = vld [vmem:[%s3 + $0x68] sm:$0xff]
        %v498 = vld [vmem:[%s3 + $0x70] sm:$0xff]
        %v499 = vld [vmem:[%s3 + $0x78] sm:$0xff]
        %v500 = vld [vmem:[%s3 + $0x80] sm:$0xff]
        %v501 = vld [vmem:[%s3 + $0x88] sm:$0xff]
        %v502 = vld [vmem:[%s3 + $0x90] sm:$0xff]
        %v503 = vld [vmem:[%s3 + $0x98] sm:$0xff]
        %v504 = vld [vmem:[%s3 + $0xa0] sm:$0xff]
        %v505 = vld [vmem:[%s3 + $0xa8] sm:$0xff]
        %v506 = vld [vmem:[%s3 + $0xb0] sm:$0xff]
        %v507 = vld [vmem:[%s3 + $0xb8] sm:$0xff]
        %v508 = vld [vmem:[%s3 + $0xc0] sm:$0xff]
        %v509 = vld [vmem:[%s3 + $0xc8] sm:$0xff]
        %v510 = vld [vmem:[%s3 + $0xd0] sm:$0xff]
        %v511 = vld [vmem:[%s3 + $0xd8] sm:$0xff]
        %v512 = vld [vmem:[%s3 + $0xe0] sm:$0xff]
        %v513 = vld [vmem:[%s3 + $0xe8] sm:$0xff]
        %v514 = vld [vmem:[%s3 + $0xf0] sm:$0xff]
        %v515 = vld [vmem:[%s3 + $0xf8] sm:$0xff]
        %v516 = vld [vmem:[%s4] sm:$0x1]
        %v518 = vlaneseq
        %v519 = vshrl.u32 %v518, 7
        %v520 = vsub.s32 0, %v519
        %v521 = vrot.slane %v516, %v520
        %523 = vmatprep.subr.mxu0 0.0
        %524 = vmatpush1.msra.mxu0 %v499
        %525 = vmatprep.subr.mxu0 0.0
        %526 = vmatpush1.msra.mxu0 %v498
        %527 = vmatprep.subr.mxu0 0.0
        %528 = vmatpush1.msra.mxu0 %v497
        %529 = vmatprep.subr.mxu0 0.0
        %530 = vmatpush1.msra.mxu0 %v496
        %531 = vmatprep.subr.mxu0 0.0
        %532 = vmatpush1.msra.mxu0 %v495
        %533 = vmatprep.subr.mxu0 0.0
        %534 = vmatpush1.msra.mxu0 %v494
        %535 = vmatprep.subr.mxu0 0.0
        %536 = vmatpush1.msra.mxu0 %v493
        %537 = vmatprep.subr.mxu0 0.0
        %538 = vmatpush1.msra.mxu0 %v492
        %539 = vmatprep.subr.mxu0 0.0
        %540 = vmatpush1.msra.mxu0 %v491
        %541 = vmatprep.subr.mxu0 0.0
        %542 = vmatpush1.msra.mxu0 %v490
        %543 = vmatprep.subr.mxu0 0.0
        %544 = vmatpush1.msra.mxu0 %v489
        %545 = vmatprep.subr.mxu0 0.0
        %546 = vmatpush1.msra.mxu0 %v488
        %547 = vmatprep.subr.mxu0 0.0
        %548 = vmatpush1.msra.mxu0 %v487
        %549 = vmatprep.subr.mxu0 0.0
        %550 = vmatpush1.msra.mxu0 %v486
        %551 = vmatprep.subr.mxu0 0.0
        %552 = vmatpush1.msra.mxu0 %v485
        %553 = vmatprep.subr.mxu0 0.0
        %554 = vmatpush1.msra.mxu0 %v484
        %555 = vmatprep.subr.mxu0 0.0
        %556 = vmatpush2.msra.mxu0 %v515
        %557 = vmatprep.subr.mxu0 0.0
        %558 = vmatpush2.msra.mxu0 %v514
        %559 = vmatprep.subr.mxu0 0.0
        %560 = vmatpush2.msra.mxu0 %v513
        %561 = vmatprep.subr.mxu0 0.0
        %562 = vmatpush2.msra.mxu0 %v512
        %563 = vmatprep.subr.mxu0 0.0
        %564 = vmatpush2.msra.mxu0 %v511
        %565 = vmatprep.subr.mxu0 0.0
        %566 = vmatpush2.msra.mxu0 %v510
        %567 = vmatprep.subr.mxu0 0.0
        %568 = vmatpush2.msra.mxu0 %v509
        %569 = vmatprep.subr.mxu0 0.0
        %570 = vmatpush2.msra.mxu0 %v508
        %571 = vmatprep.subr.mxu0 0.0
        %572 = vmatpush2.msra.mxu0 %v507
        %573 = vmatprep.subr.mxu0 0.0
        %574 = vmatpush2.msra.mxu0 %v506
        %575 = vmatprep.subr.mxu0 0.0
        %576 = vmatpush2.msra.mxu0 %v505
        %577 = vmatprep.subr.mxu0 0.0
        %578 = vmatpush2.msra.mxu0 %v504
        %579 = vmatprep.subr.mxu0 0.0
        %580 = vmatpush2.msra.mxu0 %v503
        %581 = vmatprep.subr.mxu0 0.0
        %582 = vmatpush2.msra.mxu0 %v502
        %583 = vmatprep.subr.mxu0 0.0
        %584 = vmatpush2.msra.mxu0 %v501
        %585 = vmatprep.subr.mxu0 0.0
        %586 = vmatpush2.msra.mxu0 %v500
        %587 = vmatprep.mubr.f32.mxu0 %v483
        %588 = vmatmul.mubr.f32.gmra.mxu0 %v482
        %v589 = vpop.f32.mrf.mxu0
        %v590 = vadd.f32 %v521, %v589
        %v591 = vpop.f32.mrf.mxu0
        %592 = vdwg.mxu0
        %vm593 = vcmp.gt.f32.partialorder %v590, 0.0
        %v594 = vmul.f32 %v590, 0.01
        %v595 = vsel %vm593, %v590, %v594
        %v596 = vld [vmem:[%s5] sm:$0xff]
        %v597 = vld [vmem:[%s5 + $0x8] sm:$0xff]
        %v598 = vld [vmem:[%s5 + $0x10] sm:$0xff]
        %v599 = vld [vmem:[%s5 + $0x18] sm:$0xff]
        %v600 = vld [vmem:[%s5 + $0x20] sm:$0xff]
        %v601 = vld [vmem:[%s5 + $0x28] sm:$0xff]
        %v602 = vld [vmem:[%s5 + $0x30] sm:$0xff]
        %v603 = vld [vmem:[%s5 + $0x38] sm:$0xff]
        %v604 = vld [vmem:[%s5 + $0x40] sm:$0xff]
        %v605 = vld [vmem:[%s5 + $0x48] sm:$0xff]
        %v606 = vld [vmem:[%s5 + $0x50] sm:$0xff]
        %v607 = vld [vmem:[%s5 + $0x58] sm:$0xff]
        %v608 = vld [vmem:[%s5 + $0x60] sm:$0xff]
        %v609 = vld [vmem:[%s5 + $0x68] sm:$0xff]
        %v610 = vld [vmem:[%s5 + $0x70] sm:$0xff]
        %v611 = vld [vmem:[%s5 + $0x78] sm:$0xff]
        %v612 = vld [vmem:[%s6] sm:$0x1]
        %v614 = vlaneseq
        %v615 = vshrl.u32 %v614, 7
        %v616 = vsub.s32 0, %v615
        %v617 = vrot.slane %v612, %v616
        %619 = vmatprep.subr.mxu0 0.0
        %620 = vmatpush1.msra.mxu0 %v611
        %621 = vmatprep.subr.mxu0 0.0
        %622 = vmatpush1.msra.mxu0 %v610
        %623 = vmatprep.subr.mxu0 0.0
        %624 = vmatpush1.msra.mxu0 %v609
        %625 = vmatprep.subr.mxu0 0.0
        %626 = vmatpush1.msra.mxu0 %v608
        %627 = vmatprep.subr.mxu0 0.0
        %628 = vmatpush1.msra.mxu0 %v607
        %629 = vmatprep.subr.mxu0 0.0
        %630 = vmatpush1.msra.mxu0 %v606
        %631 = vmatprep.subr.mxu0 0.0
        %632 = vmatpush1.msra.mxu0 %v605
        %633 = vmatprep.subr.mxu0 0.0
        %634 = vmatpush1.msra.mxu0 %v604
        %635 = vmatprep.subr.mxu0 0.0
        %636 = vmatpush1.msra.mxu0 %v603
        %637 = vmatprep.subr.mxu0 0.0
        %638 = vmatpush1.msra.mxu0 %v602
        %639 = vmatprep.subr.mxu0 0.0
        %640 = vmatpush1.msra.mxu0 %v601
        %641 = vmatprep.subr.mxu0 0.0
        %642 = vmatpush1.msra.mxu0 %v600
        %643 = vmatprep.subr.mxu0 0.0
        %644 = vmatpush1.msra.mxu0 %v599
        %645 = vmatprep.subr.mxu0 0.0
        %646 = vmatpush1.msra.mxu0 %v598
        %647 = vmatprep.subr.mxu0 0.0
        %648 = vmatpush1.msra.mxu0 %v597
        %649 = vmatprep.subr.mxu0 0.0
        %650 = vmatpush1.msra.mxu0 %v596
        %651 = vmatprep.subr.mxu0 0.0
        %652 = vmatpush2.msra.mxu0 0.0
        %653 = vmatprep.subr.mxu0 0.0
        %654 = vmatpush2.msra.mxu0 0.0
        %655 = vmatprep.subr.mxu0 0.0
        %656 = vmatpush2.msra.mxu0 0.0
        %657 = vmatprep.subr.mxu0 0.0
        %658 = vmatpush2.msra.mxu0 0.0
        %659 = vmatprep.subr.mxu0 0.0
        %660 = vmatpush2.msra.mxu0 0.0
        %661 = vmatprep.subr.mxu0 0.0
        %662 = vmatpush2.msra.mxu0 0.0
        %663 = vmatprep.subr.mxu0 0.0
        %664 = vmatpush2.msra.mxu0 0.0
        %665 = vmatprep.subr.mxu0 0.0
        %666 = vmatpush2.msra.mxu0 0.0
        %667 = vmatprep.subr.mxu0 0.0
        %668 = vmatpush2.msra.mxu0 0.0
        %669 = vmatprep.subr.mxu0 0.0
        %670 = vmatpush2.msra.mxu0 0.0
        %671 = vmatprep.subr.mxu0 0.0
        %672 = vmatpush2.msra.mxu0 0.0
        %673 = vmatprep.subr.mxu0 0.0
        %674 = vmatpush2.msra.mxu0 0.0
        %675 = vmatprep.subr.mxu0 0.0
        %676 = vmatpush2.msra.mxu0 0.0
        %677 = vmatprep.subr.mxu0 0.0
        %678 = vmatpush2.msra.mxu0 0.0
        %679 = vmatprep.subr.mxu0 0.0
        %680 = vmatpush2.msra.mxu0 0.0
        %681 = vmatprep.subr.mxu0 0.0
        %682 = vmatpush2.msra.mxu0 0.0
        %683 = vmatprep.mubr.f32.mxu0 0.0
        %684 = vmatmul.mubr.f32.gmra.mxu0 %v595
        %v685 = vpop.f32.mrf.mxu0
        %v686 = vadd.f32 %v617, %v685
        %v687 = vpop.f32.mrf.mxu0
        %688 = vdwg.mxu0
        %vm689 = vcmask 523264
        %690 = vst.msk [vmem:[%s385] sm:$0xff] %vm689, %v686
        %v691 = vld [vmem:[%s7] sm:$0xff]
        %v692 = vld [vmem:[%s7 + $0x8] sm:$0xff]
        %v693 = vld [vmem:[%s7 + $0x10] sm:$0xff]
        %v694 = vld [vmem:[%s7 + $0x18] sm:$0xff]
        %v695 = vld [vmem:[%s7 + $0x20] sm:$0xff]
        %v696 = vld [vmem:[%s7 + $0x28] sm:$0xff]
        %v697 = vld [vmem:[%s7 + $0x30] sm:$0xff]
        %v698 = vld [vmem:[%s7 + $0x38] sm:$0xff]
        %v699 = vld [vmem:[%s7 + $0x40] sm:$0xff]
        %v700 = vld [vmem:[%s7 + $0x48] sm:$0xff]
        %v701 = vld [vmem:[%s7 + $0x50] sm:$0xff]
        %v702 = vld [vmem:[%s7 + $0x58] sm:$0xff]
        %v703 = vld [vmem:[%s7 + $0x60] sm:$0xff]
        %v704 = vld [vmem:[%s7 + $0x68] sm:$0xff]
        %v705 = vld [vmem:[%s7 + $0x70] sm:$0xff]
        %v706 = vld [vmem:[%s7 + $0x78] sm:$0xff]
        %v707 = vld [vmem:[%s8] sm:$0x1]
        %v709 = vlaneseq
        %v710 = vshrl.u32 %v709, 7
        %v711 = vsub.s32 0, %v710
        %v712 = vrot.slane %v707, %v711
        %714 = vmatprep.subr.mxu0 0.0
        %715 = vmatpush1.msra.mxu0 %v706
        %716 = vmatprep.subr.mxu0 0.0
        %717 = vmatpush1.msra.mxu0 %v705
        %718 = vmatprep.subr.mxu0 0.0
        %719 = vmatpush1.msra.mxu0 %v704
        %720 = vmatprep.subr.mxu0 0.0
        %721 = vmatpush1.msra.mxu0 %v703
        %722 = vmatprep.subr.mxu0 0.0
        %723 = vmatpush1.msra.mxu0 %v702
        %724 = vmatprep.subr.mxu0 0.0
        %725 = vmatpush1.msra.mxu0 %v701
        %726 = vmatprep.subr.mxu0 0.0
        %727 = vmatpush1.msra.mxu0 %v700
        %728 = vmatprep.subr.mxu0 0.0
        %729 = vmatpush1.msra.mxu0 %v699
        %730 = vmatprep.subr.mxu0 0.0
        %731 = vmatpush1.msra.mxu0 %v698
        %732 = vmatprep.subr.mxu0 0.0
        %733 = vmatpush1.msra.mxu0 %v697
        %734 = vmatprep.subr.mxu0 0.0
        %735 = vmatpush1.msra.mxu0 %v696
        %736 = vmatprep.subr.mxu0 0.0
        %737 = vmatpush1.msra.mxu0 %v695
        %738 = vmatprep.subr.mxu0 0.0
        %739 = vmatpush1.msra.mxu0 %v694
        %740 = vmatprep.subr.mxu0 0.0
        %741 = vmatpush1.msra.mxu0 %v693
        %742 = vmatprep.subr.mxu0 0.0
        %743 = vmatpush1.msra.mxu0 %v692
        %744 = vmatprep.subr.mxu0 0.0
        %745 = vmatpush1.msra.mxu0 %v691
        %746 = vmatprep.subr.mxu0 0.0
        %747 = vmatpush2.msra.mxu0 0.0
        %748 = vmatprep.subr.mxu0 0.0
        %749 = vmatpush2.msra.mxu0 0.0
        %750 = vmatprep.subr.mxu0 0.0
        %751 = vmatpush2.msra.mxu0 0.0
        %752 = vmatprep.subr.mxu0 0.0
        %753 = vmatpush2.msra.mxu0 0.0
        %754 = vmatprep.subr.mxu0 0.0
        %755 = vmatpush2.msra.mxu0 0.0
        %756 = vmatprep.subr.mxu0 0.0
        %757 = vmatpush2.msra.mxu0 0.0
        %758 = vmatprep.subr.mxu0 0.0
        %759 = vmatpush2.msra.mxu0 0.0
        %760 = vmatprep.subr.mxu0 0.0
        %761 = vmatpush2.msra.mxu0 0.0
        %762 = vmatprep.subr.mxu0 0.0
        %763 = vmatpush2.msra.mxu0 0.0
        %764 = vmatprep.subr.mxu0 0.0
        %765 = vmatpush2.msra.mxu0 0.0
        %766 = vmatprep.subr.mxu0 0.0
        %767 = vmatpush2.msra.mxu0 0.0
        %768 = vmatprep.subr.mxu0 0.0
        %769 = vmatpush2.msra.mxu0 0.0
        %770 = vmatprep.subr.mxu0 0.0
        %771 = vmatpush2.msra.mxu0 0.0
        %772 = vmatprep.subr.mxu0 0.0
        %773 = vmatpush2.msra.mxu0 0.0
        %774 = vmatprep.subr.mxu0 0.0
        %775 = vmatpush2.msra.mxu0 0.0
        %776 = vmatprep.subr.mxu0 0.0
        %777 = vmatpush2.msra.mxu0 0.0
        %778 = vmatprep.mubr.f32.mxu0 0.0
        %779 = vmatmul.mubr.f32.gmra.mxu0 %v595
        %v780 = vpop.f32.mrf.mxu0
        %v781 = vadd.f32 %v712, %v780
        %v782 = vpop.f32.mrf.mxu0
        %783 = vdwg.mxu0
        %vm784 = vcmask 80896
        %785 = vst.msk [vmem:[%s378] sm:$0xff] %vm784, %v781
        %s786 = sand.u32 %s233, 1
        %s787 = scalar_lea.sflag [#allocation4], %s786
        %s788 = sand.u32 %s233, 1
        %s789 = smul.addr %s788, 8
        %s790 = scalar_lea.vmem [#allocation5], %s789
        %s791 = sand.u32 %s259, 1
        %s792 = scalar_lea.sflag [#allocation7], %s791
        %s793 = sand.u32 %s259, 1
        %s794 = smul.addr %s793, 8
        %s795 = scalar_lea.vmem [#allocation6], %s794
        // Predicated region
        $region61: #{tpu_custom_call.1} parent=55 // pred_check
          %p796 = pneg %p243
        $region62: #{tpu_custom_call.1} parent=55 // pred_check_branch
          %798 = sbr.rel (%p796) target = $region64
        $region63: #{tpu_custom_call.1} parent=55 // pred_region
          %s800 = ssub.s32 128, 128
          %801 = vsyncadd %s787, %s800
          %s802 = smul.addr %s31, 128
          %s803 = scalar_lea.hbm %s9, %s802
          %s805 = sshll.u32 %s790, 4
          %s806 = int_to_ptr.vmem [resolvable:$true] %s805
          %808 = dma.vmem_to_hbm [thread:$0]  %s806, 128, %s803, %s787
        $region64: #{tpu_custom_call.1} parent=55 // pred_fallthru
          _
        // Predicated region
        $region65: #{tpu_custom_call.1} parent=55 // pred_check
          %p809 = pneg %p269
        $region66: #{tpu_custom_call.1} parent=55 // pred_check_branch
          %811 = sbr.rel (%p809) target = $region68
        $region67: #{tpu_custom_call.1} parent=55 // pred_region
          %s813 = ssub.s32 128, 128
          %814 = vsyncadd %s792, %s813
          %s815 = smul.addr %s31, 128
          %s816 = scalar_lea.hbm %s10, %s815
          %s818 = sshll.u32 %s795, 4
          %s819 = int_to_ptr.vmem [resolvable:$true] %s818
          %821 = dma.vmem_to_hbm [thread:$0]  %s819, 128, %s816, %s792
        $region68: #{tpu_custom_call.1} parent=55 // pred_fallthru
          _
      $region56: #{tpu_custom_call.1} parent=5 // pred_fallthru
        _
      %p822 = scmp.le.s32.totalorder 2, %s26
      // Predicated region
      $region69: #{tpu_custom_call.1} parent=5 // pred_check
        %p823 = pneg %p822
      $region70: #{tpu_custom_call.1} parent=5 // pred_check_branch
        %825 = sbr.rel (%p823) target = $region72
      $region71: #{tpu_custom_call.1} parent=5 // pred_region
        %s826 = ssub.s32 %s26, 2
        // Predicated region
        $region73: #{tpu_custom_call.1} parent=71 // pred_check
          %p827 = pneg %p249
        $region74: #{tpu_custom_call.1} parent=71 // pred_check_branch
          %829 = sbr.rel (%p827) target = $region76
        $region75: #{tpu_custom_call.1} parent=71 // pred_region
          %s830 = sand.u32 %s234, 1
          %s831 = scalar_lea.sflag [#allocation4], %s830
          %s832 = sand.u32 %s234, 1
          %s833 = smul.addr %s832, 8
          %s834 = scalar_lea.vmem [#allocation5], %s833
          %835 = dma.done %s831, 128
        $region76: #{tpu_custom_call.1} parent=71 // pred_fallthru
          _
        // Predicated region
        $region77: #{tpu_custom_call.1} parent=71 // pred_check
          %p836 = pneg %p275
        $region78: #{tpu_custom_call.1} parent=71 // pred_check_branch
          %838 = sbr.rel (%p836) target = $region80
        $region79: #{tpu_custom_call.1} parent=71 // pred_region
          %s839 = sand.u32 %s260, 1
          %s840 = scalar_lea.sflag [#allocation7], %s839
          %s841 = sand.u32 %s260, 1
          %s842 = smul.addr %s841, 8
          %s843 = scalar_lea.vmem [#allocation6], %s842
          %844 = dma.done %s840, 128
        $region80: #{tpu_custom_call.1} parent=71 // pred_fallthru
          _
      $region72: #{tpu_custom_call.1} parent=5 // pred_fallthru
        _
    $region6: #{tpu_custom_call.1} parent=1 // loop_footer
      %s30 = sadd.s32 1, %s26
    $region7: #{tpu_custom_call.1} parent=1 // loop_footer_branch
      %25 = sbr.rel target = $region3
    $region8: #{tpu_custom_call.1} parent=1 // loop_exit
      _
    %845 = vsyncpa [#allocation3], 1
    %s846 = scalar_lea.sflag [#allocation3], 1
    %847 = vsyncpa %s846, 1
    %848 = vsyncpa [#allocation4], 1
    %s849 = scalar_lea.sflag [#allocation4], 1
    %850 = vsyncpa %s849, 1
    %851 = vsyncpa [#allocation7], 1
    %s852 = scalar_lea.sflag [#allocation7], 1
    %853 = vsyncpa %s852, 1

</llo_original>
